<compile_context>
chip_gen: v7x
topology: tpu7x:2x2x1
jax: 0.10.0
libtpu: 0.0.40
codegen_flags: <defaults>
</compile_context>

<pallas_src>
import math

import jax
import jax.numpy as jnp
from jax.experimental import pallas as pl
from jax.experimental.pallas import tpu as pltpu

_INV_SQRT2 = 1.0 / math.sqrt(2.0)


def _gelu_f32(x):
    # Exact GELU (matches the torch.erf-based reference): x * 0.5 * (1 + erf(x / sqrt(2)))
    return x * 0.5 * (1.0 + jax.lax.erf(x * _INV_SQRT2))


def _bert_intermediate_kernel(x_ref, w_ref, b_ref, o_ref):
    # x_ref: (tm, K) compute dtype     w_ref: (tn, K) native nn.Linear layout
    # b_ref: (1, tn) f32               o_ref: (tm, tn) activation dtype
    # Single-shot K: contract x's last dim against w's last dim (trans_b on the MXU),
    # accumulate in f32, then fused bias-add + exact erf-GELU in f32.
    z = jax.lax.dot_general(
        x_ref[...],
        w_ref[...],
        dimension_numbers=(((1,), (1,)), ((), ())),
        preferred_element_type=jnp.float32,
    )
    z = z + b_ref[...]
    o_ref[...] = _gelu_f32(z).astype(o_ref.dtype)


def _round_up(x, m):
    return ((x + m - 1) // m) * m


def bert_intermediate(
    x,
    weight,
    bias,
    *,
    tm=512,
    compute_dtype=jnp.bfloat16,
    w_resident_budget_bytes=24 << 20,
):
    """x: (..., hidden); weight: (intermediate, hidden); bias: (intermediate,)."""
    orig_shape = x.shape
    hidden = orig_shape[-1]
    inter = weight.shape[0]
    assert weight.shape == (inter, hidden)
    assert bias.shape == (inter,)

    out_dtype = x.dtype
    itemsize = jnp.dtype(compute_dtype).itemsize
    out_itemsize = jnp.dtype(out_dtype).itemsize

    # --- row (M) tiling: pad rows to a multiple of the 8-aligned tile, never full-dim fallback.
    x2 = x.reshape(-1, hidden)
    rows = x2.shape[0]
    tm = _round_up(max(tm, 8), 8)
    tm_eff = min(tm, _round_up(rows, 8))
    rows_p = _round_up(rows, tm_eff)
    if rows_p != rows:
        x2 = jnp.pad(x2, ((0, rows_p - rows), (0, 0)))

    # --- N tiling: keep the full weight resident in VMEM when it fits the budget,
    # otherwise fall back to lane-dense N tiles (divisors of `inter`).
    if 2 * inter * hidden * itemsize <= w_resident_budget_bytes:
        tn = inter
    else:
        tn = inter
        for cand in (2048, 1024, 512, 256, 128):
            if inter % cand == 0:
                tn = cand
                break

    # --- bf16 matmul inputs (f32 accumulation stays inside the kernel); bias stays f32.
    x2 = x2.astype(compute_dtype)
    w = weight.astype(compute_dtype)          # native (inter, hidden) layout: no transpose
    b2 = bias.astype(jnp.float32).reshape(1, inter)

    grid = (rows_p // tm_eff, inter // tn)    # M leading parallel axis, N second

    # Explicit VMEM budget: double-buffered x/w/bias/out tiles + margin.
    vmem_est = (
        2 * tm_eff * hidden * itemsize        # x tiles
        + 2 * tn * hidden * itemsize          # w tiles (resident: fetched once)
        + 2 * tn * 4                          # bias tiles (f32)
        + 2 * tm_eff * tn * out_itemsize      # out tiles
        + (2 << 20)                           # margin
    )
    vmem_limit = int(max(vmem_est, 32 << 20))

    out = pl.pallas_call(
        _bert_intermediate_kernel,
        out_shape=jax.ShapeDtypeStruct((rows_p, inter), out_dtype),
        grid=grid,
        in_specs=[
            pl.BlockSpec((tm_eff, hidden), lambda i, j: (i, 0)),  # x: streamed once over M
            pl.BlockSpec((tn, hidden), lambda i, j: (j, 0)),      # W: resident when tn==inter
            pl.BlockSpec((1, tn), lambda i, j: (0, j)),           # bias
        ],
        out_specs=pl.BlockSpec((tm_eff, tn), lambda i, j: (i, j)),
        compiler_params=pltpu.CompilerParams(
            dimension_semantics=("parallel", "parallel"),
            vmem_limit_bytes=vmem_limit,
        ),
    )(x2, w, b2)

    if rows_p != rows:
        out = out[:rows]
    return out.reshape(orig_shape[:-1] + (inter,))


if __name__ == "__main__":
    key = jax.random.PRNGKey(0)
    kx, kw, kb = jax.random.split(key, 3)

    # Small shapes consistent with BertIntermediate: hidden=32, intermediate=4*hidden=128.
    batch, seq, hidden = 2, 8, 32
    intermediate = 4 * hidden  # 128 -> lane-dense output even at demo size

    x = jax.random.normal(kx, (batch, seq, hidden), dtype=jnp.float32)
    bound = 1.0 / math.sqrt(hidden)
    weight = jax.random.uniform(
        kw, (intermediate, hidden), dtype=jnp.float32, minval=-bound, maxval=bound
    )
    bias = jax.random.uniform(
        kb, (intermediate,), dtype=jnp.float32, minval=-bound, maxval=bound
    )

    y = jax.block_until_ready(bert_intermediate(x, weight, bias))
    assert y.shape == (batch, seq, intermediate)
    assert y.dtype == x.dtype

    # Reference using the same bf16-rounded matmul inputs (f32 accumulate, f32 erf-GELU):
    # isolates kernel correctness from the intentional bf16 input cast.
    xr = x.astype(jnp.bfloat16).astype(jnp.float32)
    wr = weight.astype(jnp.bfloat16).astype(jnp.float32)
    z = xr @ wr.T + bias
    ref = z * 0.5 * (1.0 + jax.scipy.special.erf(z * _INV_SQRT2))
    assert jnp.allclose(y, ref, atol=1e-4, rtol=1e-3), "mismatch vs bf16-rounded reference"

    # Loose sanity check against the pure-f32 PyTorch-equivalent math.
    z32 = x @ weight.T + bias
    ref32 = z32 * 0.5 * (1.0 + jax.scipy.special.erf(z32 * _INV_SQRT2))
    assert jnp.allclose(y, ref32, atol=3e-2, rtol=3e-2), "mismatch vs f32 reference"

    print("KERNEL_OK")
</pallas_src>

<mosaic_0001>
module attributes {stable_mosaic.version = 11 : i64} {
  func.func @_bert_intermediate_kernel(%arg0: i32, %arg1: i32, %arg2: memref<16x32xbf16, #tpu.memory_space<vmem>>, %arg3: memref<128x32xbf16, #tpu.memory_space<vmem>>, %arg4: memref<1x128xf32, #tpu.memory_space<vmem>>, %arg5: memref<16x128xf32, #tpu.memory_space<vmem>>) attributes {dimension_semantics = [#tpu.dimension_semantics<parallel>, #tpu.dimension_semantics<parallel>], iteration_bounds = array<i64: 1, 1>, scalar_prefetch = 0 : i64, scratch_operands = 0 : i64, tpu.core_type = #tpu.core_type<tc>, window_params = [{transform_indices = @transform_0, window_bounds = array<i64: 16, 32>}, {transform_indices = @transform_1, window_bounds = array<i64: 128, 32>}, {transform_indices = @transform_2, window_bounds = array<i64: 1, 128>}, {transform_indices = @transform_3, window_bounds = array<i64: 16, 128>}]} {
    %c0 = arith.constant 0 : index
    %c0_0 = arith.constant 0 : index
    %0 = vector.load %arg2[%c0, %c0_0] : memref<16x32xbf16, #tpu.memory_space<vmem>>, vector<16x32xbf16>
    %c0_1 = arith.constant 0 : index
    %c0_2 = arith.constant 0 : index
    %1 = vector.load %arg3[%c0_1, %c0_2] : memref<128x32xbf16, #tpu.memory_space<vmem>>, vector<128x32xbf16>
    %cst = arith.constant dense<0.000000e+00> : vector<16x128xf32>
    %2 = tpu.matmul %0, %1, %cst {dimension_numbers = #tpu.dot_dimension_numbers<[1], [1], [0], [0], [0, 0, 1, 0], [], []>} : vector<16x32xbf16>, vector<128x32xbf16>, vector<16x128xf32> -> vector<16x128xf32>
    %c0_3 = arith.constant 0 : index
    %c0_4 = arith.constant 0 : index
    %3 = vector.load %arg4[%c0_3, %c0_4] : memref<1x128xf32, #tpu.memory_space<vmem>>, vector<1x128xf32>
    %4 = vector.broadcast %3 : vector<1x128xf32> to vector<16x128xf32>
    %5 = arith.addf %2, %4 : vector<16x128xf32>
    %cst_5 = arith.constant 5.000000e-01 : f32
    %6 = vector.broadcast %cst_5 : f32 to vector<16x128xf32>
    %7 = arith.mulf %5, %6 : vector<16x128xf32>
    %cst_6 = arith.constant 0.707106769 : f32
    %8 = vector.broadcast %cst_6 : f32 to vector<16x128xf32>
    %9 = arith.mulf %5, %8 : vector<16x128xf32>
    %10 = math.erf %9 : vector<16x128xf32>
    %cst_7 = arith.constant 1.000000e+00 : f32
    %11 = vector.broadcast %cst_7 : f32 to vector<16x128xf32>
    %12 = arith.addf %11, %10 : vector<16x128xf32>
    %13 = arith.mulf %7, %12 : vector<16x128xf32>
    %c0_8 = arith.constant 0 : index
    %c0_9 = arith.constant 0 : index
    %14 = vector.load %arg5[%c0_8, %c0_9] : memref<16x128xf32, #tpu.memory_space<vmem>>, vector<16x128xf32>
    tpu.vector_store %arg5[%c0_8, %c0_9], %13 {strides = array<i32>} : memref<16x128xf32, #tpu.memory_space<vmem>>, vector<16x128xf32>,
    return
  }
  func.func @transform_0(%arg0: i32, %arg1: i32) -> (i32, i32) {
    %c0_i32 = arith.constant 0 : i32
    %c0_i32_0 = arith.constant 0 : i32
    return %arg0, %c0_i32 : i32, i32
  }
  func.func @transform_1(%arg0: i32, %arg1: i32) -> (i32, i32) {
    %c0_i32 = arith.constant 0 : i32
    %c0_i32_0 = arith.constant 0 : i32
    return %arg1, %c0_i32 : i32, i32
  }
  func.func @transform_2(%arg0: i32, %arg1: i32) -> (i32, i32) {
    %c0_i32 = arith.constant 0 : i32
    %c0_i32_0 = arith.constant 0 : i32
    return %c0_i32, %arg1 : i32, i32
  }
  func.func @transform_3(%arg0: i32, %arg1: i32) -> (i32, i32) {
    %c0_i32 = arith.constant 0 : i32
    return %arg0, %arg1 : i32, i32
  }
}

</mosaic_0001>

<llo_original>
// kernel: tpu_custom_call.1
$region0: #{tpu_custom_call.1}
  #allocation0 [shape = 'u32[]', space=smem, size = 0x4, offset = 0x4, fixed_abs, tag = 'smem constant byte address 0x4 - core index']
  #allocation1 [shape = 'u32[144,128]{1,0:T(1,128)}', space=vmem, size = 0x12000, scoped, tag = 'internal scratch']
  %s0 = inlined_call_operand.vmem [shape: bf16[16,32], index: 0, kind: input, shape index: {}]
  %s1 = inlined_call_operand.vmem [shape: bf16[128,32], index: 1, kind: input, shape index: {}]
  %s2 = inlined_call_operand.vmem [shape: f32[1,128], index: 2, kind: input, shape index: {}]
  %s3 = inlined_call_operand.hbm [shape: f32[16,128], index: 3, kind: output, shape index: {}]
  %s4 = sld [smem:[#allocation0]]
  $region22: #{tpu_custom_call.1} parent=0
    _
  %s6 = ssub.s32 1, %s4
  %s7 = scalar_select 0, %s6, %s4
  $region1: #{tpu_custom_call.1} parent=0
    #allocation2 [shape = 'u8[8192]{0}', space=vmem, size = 0x2000, scoped, tag = 'output window, operand 0, single buffered']
    #allocation3 [shape = 's32[1]{0}', space=sflag, size = 0x4, scoped, tag = 'scoped memory for tpu_custom_call.1']
    %8 = vsyncpa [#allocation3], 0
    // Predicated region
    $region2: #{tpu_custom_call.1} parent=1 // pred_check
      _
    $region3: #{tpu_custom_call.1} parent=1 // pred_check_branch
      %10 = sbr.rel (0) target = $region5
    $region4: #{tpu_custom_call.1} parent=1 // pred_region
      _
    $region5: #{tpu_custom_call.1} parent=1 // pred_fallthru
      _
    // Predicated region
    $region6: #{tpu_custom_call.1} parent=1 // pred_check
      _
    $region7: #{tpu_custom_call.1} parent=1 // pred_check_branch
      %12 = sbr.rel (0) target = $region9
    $region8: #{tpu_custom_call.1} parent=1 // pred_region
      _
    $region9: #{tpu_custom_call.1} parent=1 // pred_fallthru
      _
    // Predicated region
    $region10: #{tpu_custom_call.1} parent=1 // pred_check
      _
    $region11: #{tpu_custom_call.1} parent=1 // pred_check_branch
      %14 = sbr.rel (0) target = $region13
    $region12: #{tpu_custom_call.1} parent=1 // pred_region
      _
    $region13: #{tpu_custom_call.1} parent=1 // pred_fallthru
      _
    %v16 = vld [vmem:[%s0] sm:$0xf]
    %v17 = vld [vmem:[%s0 + $0x4] sm:$0xf]
    %v18 = vld [vmem:[%s1] sm:$0xf]
    %v19 = vld [vmem:[%s1 + $0x4] sm:$0xf]
    %v20 = vld [vmem:[%s1 + $0x8] sm:$0xf]
    %v21 = vld [vmem:[%s1 + $0xc] sm:$0xf]
    %v22 = vld [vmem:[%s1 + $0x10] sm:$0xf]
    %v23 = vld [vmem:[%s1 + $0x14] sm:$0xf]
    %v24 = vld [vmem:[%s1 + $0x18] sm:$0xf]
    %v25 = vld [vmem:[%s1 + $0x1c] sm:$0xf]
    %v26 = vld [vmem:[%s1 + $0x20] sm:$0xf]
    %v27 = vld [vmem:[%s1 + $0x24] sm:$0xf]
    %v28 = vld [vmem:[%s1 + $0x28] sm:$0xf]
    %v29 = vld [vmem:[%s1 + $0x2c] sm:$0xf]
    %v30 = vld [vmem:[%s1 + $0x30] sm:$0xf]
    %v31 = vld [vmem:[%s1 + $0x34] sm:$0xf]
    %v32 = vld [vmem:[%s1 + $0x38] sm:$0xf]
    %v33 = vld [vmem:[%s1 + $0x3c] sm:$0xf]
    %v34 = vld [vmem:[%s2] sm:$0x1]
    %v36 = vlaneseq
    %v37 = vshrl.u32 %v36, 7
    %v38 = vsub.s32 0, %v37
    %v39 = vrot.slane %v34, %v38
    %v43 = vunpack.c.l.b16 %v16
    %v44 = vunpack.c.l.b16 %v17
    %v45 = vpack.c.b16 %v44, %v43
    %v62 = vunpack.c.l.b16 %v18
    %v63 = vunpack.c.l.b16 %v19
    %v64 = vunpack.c.l.b16 %v20
    %v65 = vunpack.c.l.b16 %v21
    %v66 = vunpack.c.l.b16 %v22
    %v67 = vunpack.c.l.b16 %v23
    %v68 = vunpack.c.l.b16 %v24
    %v69 = vunpack.c.l.b16 %v25
    %v70 = vunpack.c.l.b16 %v26
    %v71 = vunpack.c.l.b16 %v27
    %v72 = vunpack.c.l.b16 %v28
    %v73 = vunpack.c.l.b16 %v29
    %v74 = vunpack.c.l.b16 %v30
    %v75 = vunpack.c.l.b16 %v31
    %v76 = vunpack.c.l.b16 %v32
    %v77 = vunpack.c.l.b16 %v33
    %v78 = vpack.c.b16 %v63, %v62
    %v79 = vpack.c.b16 %v65, %v64
    %v80 = vpack.c.b16 %v67, %v66
    %v81 = vpack.c.b16 %v69, %v68
    %v82 = vpack.c.b16 %v71, %v70
    %v83 = vpack.c.b16 %v73, %v72
    %v84 = vpack.c.b16 %v75, %v74
    %v85 = vpack.c.b16 %v77, %v76
    %vm86 = vcmask 261120
    %v88 = vsel %vm86, %v45, 0
    %v91 = vsel %vm86, %v78, 0
    %v94 = vsel %vm86, %v79, 0
    %v97 = vsel %vm86, %v80, 0
    %v100 = vsel %vm86, %v81, 0
    %v103 = vsel %vm86, %v82, 0
    %v106 = vsel %vm86, %v83, 0
    %v109 = vsel %vm86, %v84, 0
    %v112 = vsel %vm86, %v85, 0
    %114 = vmatprep.subr.bf16.mxu0 0
    %115 = vmatpush1.bf16.xpose.msra.mxu0 %v91
    %116 = vmatprep.subr.bf16.mxu0 0
    %117 = vmatpush1.bf16.xpose.msra.mxu0 %v94
    %118 = vmatprep.subr.bf16.mxu0 0
    %119 = vmatpush1.bf16.xpose.msra.mxu0 %v97
    %120 = vmatprep.subr.bf16.mxu0 0
    %121 = vmatpush1.bf16.xpose.msra.mxu0 %v100
    %122 = vmatprep.subr.bf16.mxu0 0
    %123 = vmatpush1.bf16.xpose.msra.mxu0 %v103
    %124 = vmatprep.subr.bf16.mxu0 0
    %125 = vmatpush1.bf16.xpose.msra.mxu0 %v106
    %126 = vmatprep.subr.bf16.mxu0 0
    %127 = vmatpush1.bf16.xpose.msra.mxu0 %v109
    %128 = vmatprep.subr.bf16.mxu0 0
    %129 = vmatpush1.bf16.xpose.msra.mxu0 %v112
    %130 = vmatprep.subr.bf16.mxu0 0
    %131 = vmatpush1.bf16.xpose.msra.mxu0 0
    %132 = vmatprep.subr.bf16.mxu0 0
    %133 = vmatpush1.bf16.xpose.msra.mxu0 0
    %134 = vmatprep.subr.bf16.mxu0 0
    %135 = vmatpush1.bf16.xpose.msra.mxu0 0
    %136 = vmatprep.subr.bf16.mxu0 0
    %137 = vmatpush1.bf16.xpose.msra.mxu0 0
    %138 = vmatprep.subr.bf16.mxu0 0
    %139 = vmatpush1.bf16.xpose.msra.mxu0 0
    %140 = vmatprep.subr.bf16.mxu0 0
    %141 = vmatpush1.bf16.xpose.msra.mxu0 0
    %142 = vmatprep.subr.bf16.mxu0 0
    %143 = vmatpush1.bf16.xpose.msra.mxu0 0
    %144 = vmatprep.subr.bf16.mxu0 0
    %145 = vmatpush1.bf16.xpose.msra.mxu0 0
    %146 = vmatprep.mubr.bf16.mxu0 0
    %147 = vmatmul.mubr.bf16.gmra.mrb[0].mxu0 %v88
    %v148 = vpop.f32.mrb[0].mxu0
    %v149 = vadd.f32 %v39, %v148
    %v150 = vpop.f32.mrb[0].mxu0
    %v151 = vpop.f32.mrb[0].mxu0
    %v152 = vadd.f32 %v39, %v151
    %v153 = vpop.f32.mrb[0].mxu0
    %154 = vdwg.mxu0
    %v155 = vmul.f32 %v149, 0.5
    %v156 = vmul.f32 %v152, 0.5
    %v157 = vmul.f32 %v149, 0.70710677
    %v158 = vmul.f32 %v152, 0.70710677
    %v159 = verf.f32.pop %v157
    %v160 = verf.f32.pop %v158
    %v161 = vadd.f32 %v159, 1.0
    %v162 = vadd.f32 %v160, 1.0
    %v163 = vmul.f32 %v155, %v161
    %v164 = vmul.f32 %v156, %v162
    %165 = vst [vmem:[#allocation2] sm:$0xff] %v163
    %166 = vst [vmem:[#allocation2 + $0x8] sm:$0xff] %v164
    // Predicated region
    $region14: #{tpu_custom_call.1} parent=1 // pred_check
      _
    $region15: #{tpu_custom_call.1} parent=1 // pred_check_branch
      %168 = sbr.rel (0) target = $region17
    $region16: #{tpu_custom_call.1} parent=1 // pred_region
      %s170 = ssub.s32 256, 256
      %171 = vsyncadd [#allocation3], %s170
      %s172 = sshll.u32 [#allocation2], 4
      %s173 = int_to_ptr.vmem [resolvable:$true] %s172
      %178 = dma.vmem_to_hbm [thread:$0]  %s173, 256, %s3, [#allocation3], 128, 128, 8
    $region17: #{tpu_custom_call.1} parent=1 // pred_fallthru
      _
    // Predicated region
    $region18: #{tpu_custom_call.1} parent=1 // pred_check
      _
    $region19: #{tpu_custom_call.1} parent=1 // pred_check_branch
      %180 = sbr.rel (0) target = $region21
    $region20: #{tpu_custom_call.1} parent=1 // pred_region
      %181 = dma.done [#allocation3], 256
    $region21: #{tpu_custom_call.1} parent=1 // pred_fallthru
      _
    %182 = vsyncpa [#allocation3], 1

</llo_original>
